<compile_context>
chip_gen: v5e
topology: v5e:2x2
jax: 0.10.0
libtpu: 0.0.40
codegen_flags: <defaults>
</compile_context>

<pallas_src>
import jax
import jax.numpy as jnp
from jax.experimental import pallas as pl
from jax.experimental.pallas import tpu as pltpu


def _causal_conv1d_bias_relu_kernel(x_ref, w_ref, b_ref, o_ref, xh_ref):
    # x_ref:  (1, TS, C)   f32 input tile (cast to compute dtype in-kernel)
    # w_ref:  (K, C, O)    compute-dtype taps; w_ref[d] multiplies x[s - d]
    #                      (taps pre-flipped in the wrapper)
    # b_ref:  (1, O)       f32 bias
    # o_ref:  (1, TS, O)   output tile (out dtype)
    # xh_ref: (P + TS, C)  compute-dtype staging scratch.  Rows [P-(K-1), P) hold
    #                      the causal halo (last K-1 rows of the previous tile of
    #                      this batch row, or zeros at j == 0); rows [P, P+TS)
    #                      hold the current tile.  P is a multiple of 16.
    TS = x_ref.shape[1]
    K, C, _ = w_ref.shape
    Km1 = K - 1
    P = xh_ref.shape[0] - TS
    j = pl.program_id(1)

    # f32 -> compute dtype on the VPU (free slot); avoids a separate wrapper-side
    # convert pass over x in HBM.
    x = x_ref[0].astype(xh_ref.dtype)                         # (TS, C)

    if Km1 > 0:
        @pl.when(j == 0)
        def _():
            # Causal left padding: rows preceding the first tile are zeros.
            xh_ref[:P, :] = jnp.zeros((P, C), xh_ref.dtype)
        xh_ref[P:, :] = x                                     # P % 16 == 0 -> aligned

    # Tap d multiplies x shifted back by d rows.  Tap 0 comes straight from the
    # freshly cast tile; taps 1..K-1 read the halo'd staging buffer.
    acc = jnp.dot(x, w_ref[0], preferred_element_type=jnp.float32)
    for d in range(1, K):                                     # K small & static -> unrolled
        acc += jnp.dot(xh_ref[P - d:P - d + TS, :], w_ref[d],
                       preferred_element_type=jnp.float32)
    acc = acc + b_ref[...]                                    # (1, O) broadcasts over (TS, O)
    # ReLU (module default activation); dp=0 -> no dropout.
    o_ref[0] = jnp.maximum(acc, 0.0).astype(o_ref.dtype)

    if Km1 > 0:
        # Carry the last K-1 rows of this tile into the halo slot for the next
        # (in-order) sequence tile of the same batch row.
        xh_ref[P - Km1:P, :] = x[TS - Km1:, :]


def _choose_seq_tile(S, target=1024):
    """Sequence tile: big enough to amortize the ~0.35 us/step grid overhead,
    small enough that double-buffered blocks + the f32 accumulator stay a few
    MiB (fine even under v7x's 64 MiB VMEM).  Prefers an exact divisor that is a
    multiple of 16 (bf16 packed-sublane granularity); falls back to a ragged
    last tile rather than a degenerate tiny divisor."""
    if S <= target:
        return S                        # full dim -> always satisfies the (8,128) rule
    target = max(16, (target // 16) * 16)
    if S <= target:
        return S
    floor = max(256, target // 4)
    ts = target
    while ts >= floor:
        if S % ts == 0:
            return ts
        ts -= 16
    return target                        # ragged last tile (OOB rows masked on store;
                                         # halo reset at j==0 keeps it out of valid rows)


def sequence_basic_cnn_block(x, weight, bias, kernel_height,
                             compute_dtype=jnp.bfloat16,
                             out_dtype=jnp.bfloat16,
                             seq_tile=1024):
    """
    Forward pass of SequenceBasicCNNBlock (causal Conv1d + bias + ReLU; dp=0).

    x:      (B, S, C) float32   (batch, sequence_length, time_step_size)
    weight: (O, C, K) float32   PyTorch Conv1d weight layout
    bias:   (O,)      float32
    returns (B, S, O) out_dtype
    """
    B, S, C = x.shape
    O, C_w, K = weight.shape
    assert C_w == C and K == kernel_height

    # Flip the taps so that tap d multiplies x[s - d]:
    #   w_taps[d, c, o] = weight[o, c, K-1-d]
    # which reproduces Conv1d (cross-correlation) on the K-1 left-zero-padded input.
    w_taps = jnp.flip(jnp.transpose(weight, (2, 1, 0)), axis=0).astype(compute_dtype)
    bias_2d = bias.reshape(1, O).astype(jnp.float32)

    TS = _choose_seq_tile(S, seq_tile)
    nS = pl.cdiv(S, TS)
    # Halo offset: multiple of the bf16 packed-sublane granularity (16), >= K-1.
    P = max(16, ((K - 1 + 15) // 16) * 16)

    flops = 2 * B * S * K * C * O
    bytes_accessed = (B * S * C * x.dtype.itemsize                     # x read (f32, once)
                      + K * C * O * w_taps.dtype.itemsize              # weights
                      + O * 4                                          # bias
                      + B * S * O * jnp.dtype(out_dtype).itemsize)     # output write

    return pl.pallas_call(
        _causal_conv1d_bias_relu_kernel,
        out_shape=jax.ShapeDtypeStruct((B, S, O), out_dtype),
        grid_spec=pltpu.PrefetchScalarGridSpec(
            num_scalar_prefetch=0,
            grid=(B, nS),
            in_specs=[
                pl.BlockSpec((1, TS, C), lambda b, j: (b, j, 0)),
                pl.BlockSpec((K, C, O), lambda b, j: (0, 0, 0)),   # grid-invariant
                pl.BlockSpec((1, O), lambda b, j: (0, 0)),         # grid-invariant
            ],
            # True-O output block (== full last dim): no Opad over-write and no
            # wrapper-side slice pass over the whole output tensor.
            out_specs=pl.BlockSpec((1, TS, O), lambda b, j: (b, j, 0)),
            scratch_shapes=[pltpu.VMEM((P + TS, C), compute_dtype)],
        ),
        compiler_params=pltpu.CompilerParams(
            # batch: independent -> "parallel" (megacore sharding);
            # sequence: must stay "arbitrary" (in-order) because the causal halo
            # is carried in scratch across sequence tiles.
            dimension_semantics=("parallel", "arbitrary"),
            # Per-step live set is ~3 MiB at TS=1024 / O=300 -> well below the
            # default scoped VMEM limit on v5e/v6e/v7x; no override needed.
        ),
        cost_estimate=pl.CostEstimate(flops=flops, transcendentals=0,
                                      bytes_accessed=bytes_accessed),
    )(x, w_taps, bias_2d)


def _reference(x, weight, bias, kernel_height, compute_dtype=jnp.bfloat16):
    # Pure-JAX reference of the PyTorch forward pass with inputs rounded to the
    # kernel's compute dtype (bf16) and f32 accumulation, matching the kernel path.
    B, S, C = x.shape
    O, _, K = weight.shape
    xq = x.astype(compute_dtype).astype(jnp.float32)
    wq = weight.astype(compute_dtype).astype(jnp.float32)
    x_pad = jnp.pad(xq, ((0, 0), (K - 1, 0), (0, 0)))
    out = jnp.zeros((B, S, O), jnp.float32)
    for k in range(K):
        out = out + jnp.einsum("bsc,oc->bso", x_pad[:, k:k + S, :], wq[:, :, k])
    out = out + bias[None, None, :].astype(jnp.float32)
    return jnp.maximum(out, 0.0)


if __name__ == "__main__":
    # Small shapes consistent with the module's forward contract.
    batch = 2
    seq_len = 8
    time_step_size = 16     # Conv1d in_channels
    out_channels = 32       # module default is 300; kept small for the demo
    kernel_height = 3

    key = jax.random.PRNGKey(0)
    kx, kw, kb = jax.random.split(key, 3)

    x = jax.random.normal(kx, (batch, seq_len, time_step_size), dtype=jnp.float32)
    fan_in = time_step_size * kernel_height
    bound = 1.0 / (fan_in ** 0.5)
    weight = jax.random.uniform(
        kw, (out_channels, time_step_size, kernel_height),
        minval=-bound, maxval=bound, dtype=jnp.float32)
    bias = jax.random.uniform(
        kb, (out_channels,), minval=-bound, maxval=bound, dtype=jnp.float32)

    out = sequence_basic_cnn_block(x, weight, bias, kernel_height)
    out = jax.block_until_ready(out)
    assert out.shape == (batch, seq_len, out_channels)

    ref = _reference(x, weight, bias, kernel_height)
    # Kernel output is bf16 (per perf review: halves the dominant HBM write);
    # round the f32 reference the same way before comparing.
    ref_q = ref.astype(jnp.bfloat16).astype(jnp.float32)
    out_f32 = out.astype(jnp.float32)
    max_err = float(jnp.max(jnp.abs(out_f32 - ref_q)))
    assert jnp.allclose(out_f32, ref_q, atol=2e-2, rtol=2e-2), max_err

    print("KERNEL_OK")
</pallas_src>

<mosaic_0001>
module attributes {stable_mosaic.version = 11 : i64} {
  func.func @_causal_conv1d_bias_relu_kernel(%arg0: i32, %arg1: i32, %arg2: memref<1x8x16xf32, #tpu.memory_space<vmem>>, %arg3: memref<3x16x32xbf16, #tpu.memory_space<vmem>>, %arg4: memref<1x32xf32, #tpu.memory_space<vmem>>, %arg5: memref<1x8x32xbf16, #tpu.memory_space<vmem>>, %arg6: memref<24x16xbf16, #tpu.memory_space<vmem>>) attributes {dimension_semantics = [#tpu.dimension_semantics<parallel>, #tpu.dimension_semantics<arbitrary>], iteration_bounds = array<i64: 2, 1>, scalar_prefetch = 0 : i64, scratch_operands = 1 : i64, tpu.core_type = #tpu.core_type<tc>, window_params = [{transform_indices = @transform_0, window_bounds = array<i64: 1, 8, 16>}, {pipeline_mode = #tpu.pipeline_mode<synchronous>, transform_indices = @transform_1, window_bounds = array<i64: 3, 16, 32>}, {pipeline_mode = #tpu.pipeline_mode<synchronous>, transform_indices = @transform_2, window_bounds = array<i64: 1, 32>}, {transform_indices = @transform_3, window_bounds = array<i64: 1, 8, 32>}]} {
    %c0 = arith.constant 0 : index
    %c0_0 = arith.constant 0 : index
    %c0_1 = arith.constant 0 : index
    %0 = vector.load %arg2[%c0, %c0_0, %c0_1] : memref<1x8x16xf32, #tpu.memory_space<vmem>>, vector<1x8x16xf32>
    %1 = vector.shape_cast %0 : vector<1x8x16xf32> to vector<8x16xf32>
    %2 = arith.truncf %1 : vector<8x16xf32> to vector<8x16xbf16>
    %c0_i32 = arith.constant 0 : i32
    %3 = arith.cmpi eq, %arg1, %c0_i32 : i32
    %4 = arith.extui %3 : i1 to i32
    %c0_i32_2 = arith.constant 0 : i32
    %5 = arith.cmpi ne, %4, %c0_i32_2 : i32
    scf.if %5 {
      %cst_23 = arith.constant 0.000000e+00 : bf16
      %31 = vector.broadcast %cst_23 : bf16 to vector<16x16xbf16>
      %c0_24 = arith.constant 0 : index
      %c0_25 = arith.constant 0 : index
      %32 = vector.load %arg6[%c0_24, %c0_25] : memref<24x16xbf16, #tpu.memory_space<vmem>>, vector<16x16xbf16>
      tpu.vector_store %arg6[%c0_24, %c0_25], %31 {strides = array<i32>} : memref<24x16xbf16, #tpu.memory_space<vmem>>, vector<16x16xbf16>,
    } else {
    }
    %c16 = arith.constant 16 : index
    %c0_3 = arith.constant 0 : index
    %6 = vector.load %arg6[%c16, %c0_3] : memref<24x16xbf16, #tpu.memory_space<vmem>>, vector<8x16xbf16>
    tpu.vector_store %arg6[%c16, %c0_3], %2 {strides = array<i32>} : memref<24x16xbf16, #tpu.memory_space<vmem>>, vector<8x16xbf16>,
    %c0_4 = arith.constant 0 : index
    %c0_5 = arith.constant 0 : index
    %c0_6 = arith.constant 0 : index
    %7 = vector.load %arg3[%c0_4, %c0_5, %c0_6] : memref<3x16x32xbf16, #tpu.memory_space<vmem>>, vector<1x16x32xbf16>
    %8 = vector.shape_cast %7 : vector<1x16x32xbf16> to vector<16x32xbf16>
    %cst = arith.constant dense<0.000000e+00> : vector<8x32xf32>
    %9 = tpu.matmul %2, %8, %cst {dimension_numbers = #tpu.dot_dimension_numbers<[1], [0], [0], [1], [0, 0, 1, 1], [], []>} : vector<8x16xbf16>, vector<16x32xbf16>, vector<8x32xf32> -> vector<8x32xf32>
    %c15 = arith.constant 15 : index
    %c0_7 = arith.constant 0 : index
    %10 = vector.load %arg6[%c15, %c0_7] : memref<24x16xbf16, #tpu.memory_space<vmem>>, vector<8x16xbf16>
    %c1 = arith.constant 1 : index
    %c0_8 = arith.constant 0 : index
    %c0_9 = arith.constant 0 : index
    %11 = vector.load %arg3[%c1, %c0_8, %c0_9] : memref<3x16x32xbf16, #tpu.memory_space<vmem>>, vector<1x16x32xbf16>
    %12 = vector.shape_cast %11 : vector<1x16x32xbf16> to vector<16x32xbf16>
    %cst_10 = arith.constant dense<0.000000e+00> : vector<8x32xf32>
    %13 = tpu.matmul %10, %12, %cst_10 {dimension_numbers = #tpu.dot_dimension_numbers<[1], [0], [0], [1], [0, 0, 1, 1], [], []>} : vector<8x16xbf16>, vector<16x32xbf16>, vector<8x32xf32> -> vector<8x32xf32>
    %14 = arith.addf %9, %13 : vector<8x32xf32>
    %c14 = arith.constant 14 : index
    %c0_11 = arith.constant 0 : index
    %15 = vector.load %arg6[%c14, %c0_11] : memref<24x16xbf16, #tpu.memory_space<vmem>>, vector<8x16xbf16>
    %c2 = arith.constant 2 : index
    %c0_12 = arith.constant 0 : index
    %c0_13 = arith.constant 0 : index
    %16 = vector.load %arg3[%c2, %c0_12, %c0_13] : memref<3x16x32xbf16, #tpu.memory_space<vmem>>, vector<1x16x32xbf16>
    %17 = vector.shape_cast %16 : vector<1x16x32xbf16> to vector<16x32xbf16>
    %cst_14 = arith.constant dense<0.000000e+00> : vector<8x32xf32>
    %18 = tpu.matmul %15, %17, %cst_14 {dimension_numbers = #tpu.dot_dimension_numbers<[1], [0], [0], [1], [0, 0, 1, 1], [], []>} : vector<8x16xbf16>, vector<16x32xbf16>, vector<8x32xf32> -> vector<8x32xf32>
    %19 = arith.addf %14, %18 : vector<8x32xf32>
    %c0_15 = arith.constant 0 : index
    %c0_16 = arith.constant 0 : index
    %20 = vector.load %arg4[%c0_15, %c0_16] : memref<1x32xf32, #tpu.memory_space<vmem>>, vector<1x32xf32>
    %21 = vector.broadcast %20 : vector<1x32xf32> to vector<8x32xf32>
    %22 = arith.addf %19, %21 : vector<8x32xf32>
    %cst_17 = arith.constant 0.000000e+00 : f32
    %23 = vector.broadcast %cst_17 : f32 to vector<8x32xf32>
    %24 = arith.maximumf %22, %23 : vector<8x32xf32>
    %25 = arith.truncf %24 : vector<8x32xf32> to vector<8x32xbf16>
    %c0_18 = arith.constant 0 : index
    %c0_19 = arith.constant 0 : index
    %c0_20 = arith.constant 0 : index
    %26 = vector.load %arg5[%c0_18, %c0_19, %c0_20] : memref<1x8x32xbf16, #tpu.memory_space<vmem>>, vector<1x8x32xbf16>
    %27 = vector.shape_cast %26 : vector<1x8x32xbf16> to vector<8x32xbf16>
    %28 = vector.shape_cast %25 : vector<8x32xbf16> to vector<1x8x32xbf16>
    tpu.vector_store %arg5[%c0_18, %c0_19, %c0_20], %28 {strides = array<i32>} : memref<1x8x32xbf16, #tpu.memory_space<vmem>>, vector<1x8x32xbf16>,
    %29 = vector.extract_strided_slice %2 {offsets = [6, 0], sizes = [2, 16], strides = [1, 1]} : vector<8x16xbf16> to vector<2x16xbf16>
    %c14_21 = arith.constant 14 : index
    %c0_22 = arith.constant 0 : index
    %30 = vector.load %arg6[%c14_21, %c0_22] : memref<24x16xbf16, #tpu.memory_space<vmem>>, vector<2x16xbf16>
    tpu.vector_store %arg6[%c14_21, %c0_22], %29 {strides = array<i32>} : memref<24x16xbf16, #tpu.memory_space<vmem>>, vector<2x16xbf16>,
    return
  }
  func.func @transform_0(%arg0: i32, %arg1: i32) -> (i32, i32, i32) {
    %c0_i32 = arith.constant 0 : i32
    %c0_i32_0 = arith.constant 0 : i32
    return %arg0, %arg1, %c0_i32 : i32, i32, i32
  }
  func.func @transform_1(%arg0: i32, %arg1: i32) -> (i32, i32, i32) {
    %c0_i32 = arith.constant 0 : i32
    %c0_i32_0 = arith.constant 0 : i32
    %c0_i32_1 = arith.constant 0 : i32
    %c0_i32_2 = arith.constant 0 : i32
    return %c0_i32, %c0_i32_0, %c0_i32_1 : i32, i32, i32
  }
  func.func @transform_2(%arg0: i32, %arg1: i32) -> (i32, i32) {
    %c0_i32 = arith.constant 0 : i32
    %c0_i32_0 = arith.constant 0 : i32
    %c0_i32_1 = arith.constant 0 : i32
    return %c0_i32, %c0_i32_0 : i32, i32
  }
  func.func @transform_3(%arg0: i32, %arg1: i32) -> (i32, i32, i32) {
    %c0_i32 = arith.constant 0 : i32
    %c0_i32_0 = arith.constant 0 : i32
    return %arg0, %arg1, %c0_i32 : i32, i32, i32
  }
}

</mosaic_0001>

<llo_original>
// kernel: tpu_custom_call.1
$region0: #{tpu_custom_call.1}
  #allocation0 [shape = 'u32[]', space=smem, size = 0x4, offset = 0x4, fixed_abs, tag = 'smem constant byte address 0x4 - core index']
  #allocation1 [shape = 'u32[72,128]{1,0:T(1,128)}', space=vmem, size = 0x9000, scoped, tag = 'internal scratch']
  #allocation2 [shape = 'bf16[24,16]{1,0:T(8,128)(2,1)}', space=vmem, size = 0x1800, scoped, tag = 'scratch operand']
  %s0 = inlined_call_operand.hbm [shape: f32[2,8,16], index: 0, kind: input, shape index: {}]
  %s1 = inlined_call_operand.hbm [shape: bf16[3,16,32], index: 1, kind: input, shape index: {}]
  %s2 = inlined_call_operand.vmem [shape: f32[1,32], index: 2, kind: input, shape index: {}]
  %s3 = inlined_call_operand.hbm [shape: bf16[2,8,32], index: 3, kind: output, shape index: {}]
  %s4 = sld [smem:[#allocation0]]
  $region57: #{tpu_custom_call.1} parent=0
    _
  %s6 = ssub.s32 1, %s4
  %s7 = scalar_select 0, %s6, %s4
  $region1: #{tpu_custom_call.1} parent=0
    #allocation3 [shape = 'u8[8192]{0}', space=vmem, size = 0x2000, scoped, tag = 'input window, operand 0']
    #allocation4 [shape = 's32[2]{0}', space=sflag, size = 0x8, scoped, tag = 'scoped memory for tpu_custom_call.1']
    #allocation5 [shape = 's32[2]{0}', space=sflag, size = 0x8, scoped, tag = 'scoped memory for tpu_custom_call.1']
    #allocation6 [shape = 'u8[12288]{0}', space=vmem, size = 0x3000, scoped, tag = 'input window, operand 1, single buffered']
    #allocation7 [shape = 's32[1]{0}', space=sflag, size = 0x4, scoped, tag = 'scoped memory for tpu_custom_call.1']
    #allocation8 [shape = 'u8[4096]{0}', space=vmem, size = 0x1000, scoped, tag = 'output window, operand 0']
    %8 = vsyncpa [#allocation4], 0
    %s9 = scalar_lea.sflag [#allocation4], 1
    %10 = vsyncpa %s9, 0
    %11 = vsyncpa [#allocation7], 0
    %12 = vsyncpa [#allocation5], 0
    %s13 = scalar_lea.sflag [#allocation5], 1
    %14 = vsyncpa %s13, 0
    loop: start=0, step=1, limit=4
    $region2: #{tpu_custom_call.1} parent=1 // loop_pre_header
      _
    $region3: #{tpu_custom_call.1} parent=1 // loop_header
      %s16 = sphi 0, %s20
      %p17 = scmp.ge.s32.totalorder %s16, 4
      %s23 = sphi 0, %s35
      %s24 = sphi 0, %s31
      %s25 = sphi 0, %s23
      %s26 = sphi 0, %s24
      %s27 = sphi 0, %s25
      %s28 = sphi 0, %s26
      %s40 = sphi 0, %s42
      %s43 = sphi 0, %s40
      %s44 = sphi 0, %s43
      %s60 = sphi 0, %s44
      %s64 = sphi 0, %s64
      %s66 = sphi 0, %s64
      %s67 = sphi 0, %s66
      %s81 = sphi 0, %s67
      %s85 = sphi 0, %s85
      %s87 = sphi 0, %s85
      %s88 = sphi 0, %s87
      %s102 = sphi 0, %s88
      %s110 = sphi 0, %s112
      %s113 = sphi 0, %s110
      %s114 = sphi 0, %s113
      %s130 = sphi 0, %s114
    $region4: #{tpu_custom_call.1} parent=1 // loop_header_branch
      %19 = sbr.rel (%p17) target = $region8
    $region5: #{tpu_custom_call.1} parent=1 // loop_body
      %s21 = ssub.s32 %s16, 1
      %s22 = ssub.s32 %s16, 2
      %s29 = sadd.s32 1, %s24
      %p30 = scmp.ge.s32.totalorder %s29, 1
      %s31 = scalar_select %p30, 0, %s29
      %s32 = sadd.s32 1, %s23
      %s33 = scalar_select %p30, %s32, %s23
      %p34 = scmp.ge.s32.totalorder %s33, 2
      %s35 = scalar_select %p34, 0, %s33
      %s36 = ssub.s32 %s23, %s35
      %s37 = ssub.s32 %s24, %s31
      %s38 = sor.u32 %s36, %s37
      %p39 = scmp.eq.s32.totalorder %s38, 0
      %s41 = sadd.s32 %s40, 1
      %s42 = scalar_select %p39, %s40, %s41
      %p45 = pneg %p39
      %p46 = scmp.eq.s32.totalorder %s16, 1
      %p47 = por %p45, %p46
      %p48 = scmp.ne.s32.totalorder %s40, %s43
      %p49 = scmp.eq.s32.totalorder %s16, 0
      %p50 = por %p48, %p49
      %p51 = scmp.ne.s32.totalorder %s40, %s43
      %p52 = scmp.eq.s32.totalorder %s21, 1
      %p53 = por %p51, %p52
      %p54 = scmp.ne.s32.totalorder %s43, %s44
      %p55 = scmp.eq.s32.totalorder %s21, 0
      %p56 = por %p54, %p55
      %p57 = scmp.ne.s32.totalorder %s43, %s44
      %p58 = scmp.eq.s32.totalorder %s22, 1
      %p59 = por %p57, %p58
      %p61 = scmp.ne.s32.totalorder %s44, %s60
      %p62 = scmp.eq.s32.totalorder %s22, 0
      %p63 = por %p61, %p62
      %s65 = sadd.s32 %s64, 1
      %p68 = scmp.eq.s32.totalorder %s16, 1
      %p69 = scmp.ne.s32.totalorder %s64, %s66
      %p70 = scmp.eq.s32.totalorder %s16, 0
      %p71 = por %p69, %p70
      %p72 = scmp.ne.s32.totalorder %s64, %s66
      %p73 = scmp.eq.s32.totalorder %s21, 1
      %p74 = por %p72, %p73
      %p75 = scmp.ne.s32.totalorder %s66, %s67
      %p76 = scmp.eq.s32.totalorder %s21, 0
      %p77 = por %p75, %p76
      %p78 = scmp.ne.s32.totalorder %s66, %s67
      %p79 = scmp.eq.s32.totalorder %s22, 1
      %p80 = por %p78, %p79
      %p82 = scmp.ne.s32.totalorder %s67, %s81
      %p83 = scmp.eq.s32.totalorder %s22, 0
      %p84 = por %p82, %p83
      %s86 = sadd.s32 %s85, 1
      %p89 = scmp.eq.s32.totalorder %s16, 1
      %p90 = scmp.ne.s32.totalorder %s85, %s87
      %p91 = scmp.eq.s32.totalorder %s16, 0
      %p92 = por %p90, %p91
      %p93 = scmp.ne.s32.totalorder %s85, %s87
      %p94 = scmp.eq.s32.totalorder %s21, 1
      %p95 = por %p93, %p94
      %p96 = scmp.ne.s32.totalorder %s87, %s88
      %p97 = scmp.eq.s32.totalorder %s21, 0
      %p98 = por %p96, %p97
      %p99 = scmp.ne.s32.totalorder %s87, %s88
      %p100 = scmp.eq.s32.totalorder %s22, 1
      %p101 = por %p99, %p100
      %p103 = scmp.ne.s32.totalorder %s88, %s102
      %p104 = scmp.eq.s32.totalorder %s22, 0
      %p105 = por %p103, %p104
      %s106 = ssub.s32 %s23, %s35
      %s107 = ssub.s32 %s24, %s31
      %s108 = sor.u32 %s106, %s107
      %p109 = scmp.eq.s32.totalorder %s108, 0
      %s111 = sadd.s32 %s110, 1
      %s112 = scalar_select %p109, %s110, %s111
      %p115 = pneg %p109
      %p116 = scmp.eq.s32.totalorder %s16, 1
      %p117 = por %p115, %p116
      %p118 = scmp.ne.s32.totalorder %s110, %s113
      %p119 = scmp.eq.s32.totalorder %s16, 0
      %p120 = por %p118, %p119
      %p121 = scmp.ne.s32.totalorder %s110, %s113
      %p122 = scmp.eq.s32.totalorder %s21, 1
      %p123 = por %p121, %p122
      %p124 = scmp.ne.s32.totalorder %s113, %s114
      %p125 = scmp.eq.s32.totalorder %s21, 0
      %p126 = por %p124, %p125
      %p127 = scmp.ne.s32.totalorder %s113, %s114
      %p128 = scmp.eq.s32.totalorder %s22, 1
      %p129 = por %p127, %p128
      %p131 = scmp.ne.s32.totalorder %s114, %s130
      %p132 = scmp.eq.s32.totalorder %s22, 0
      %p133 = por %p131, %p132
      %p134 = scmp.le.s32.totalorder 1, %s16
      %p135 = scmp.lt.s32.totalorder %s16, 3
      %p136 = pnand %p134, %p135
      %p137 = pneg %p136
      // Predicated region
      $region9: #{tpu_custom_call.1} parent=5 // pred_check
        _
      $region10: #{tpu_custom_call.1} parent=5 // pred_check_branch
        %139 = sbr.rel (%p136) target = $region12
      $region11: #{tpu_custom_call.1} parent=5 // pred_region
        %s140 = ssub.s32 %s16, 1
        // Predicated region
        $region13: #{tpu_custom_call.1} parent=11 // pred_check
          %p141 = pneg %p77
        $region14: #{tpu_custom_call.1} parent=11 // pred_check_branch
          %143 = sbr.rel (%p141) target = $region16
        $region15: #{tpu_custom_call.1} parent=11 // pred_region
          %145 = vsyncadd [#allocation7], 0
          %s146 = sshll.u32 %s1, 4
          %s147 = int_to_ptr.hbm [resolvable:$true] %s146
          %s148 = sshll.u32 [#allocation6], 4
          %s149 = int_to_ptr.vmem [resolvable:$true] %s148
          %154 = dma.hbm_to_vmem [thread:$0]  %s147, 384, %s149, [#allocation7], 64, 64, 4
        $region16: #{tpu_custom_call.1} parent=11 // pred_fallthru
          _
        // Predicated region
        $region17: #{tpu_custom_call.1} parent=11 // pred_check
          %p155 = pneg %p98
        $region18: #{tpu_custom_call.1} parent=11 // pred_check_branch
          %157 = sbr.rel (%p155) target = $region20
        $region19: #{tpu_custom_call.1} parent=11 // pred_region
          _
        $region20: #{tpu_custom_call.1} parent=11 // pred_fallthru
          _
      $region12: #{tpu_custom_call.1} parent=5 // pred_fallthru
        _
      %p158 = scmp.lt.s32.totalorder %s16, 2
      // Predicated region
      $region21: #{tpu_custom_call.1} parent=5 // pred_check
        %p159 = pneg %p158
      $region22: #{tpu_custom_call.1} parent=5 // pred_check_branch
        %161 = sbr.rel (%p159) target = $region24
      $region23: #{tpu_custom_call.1} parent=5 // pred_region
        // Predicated region
        $region25: #{tpu_custom_call.1} parent=23 // pred_check
          %p162 = pneg %p50
        $region26: #{tpu_custom_call.1} parent=23 // pred_check_branch
          %164 = sbr.rel (%p162) target = $region28
        $region27: #{tpu_custom_call.1} parent=23 // pred_region
          %s165 = sand.u32 %s40, 1
          %s166 = scalar_lea.sflag [#allocation4], %s165
          %s167 = sand.u32 %s40, 1
          %s168 = smul.addr %s167, 8
          %s169 = scalar_lea.vmem [#allocation3], %s168
          %171 = vsyncadd %s166, 0
          %s172 = sadd.s32 %s24, %s23
          %s173 = smul.addr %s172, 8
          %s174 = scalar_lea.hbm %s0, %s173
          %s176 = sshll.u32 %s174, 4
          %s177 = int_to_ptr.hbm [resolvable:$true] %s176
          %s178 = sshll.u32 %s169, 4
          %s179 = int_to_ptr.vmem [resolvable:$true] %s178
          %181 = dma.hbm_to_vmem [thread:$0]  %s177, 128, %s179, %s166
        $region28: #{tpu_custom_call.1} parent=23 // pred_fallthru
          _
      $region24: #{tpu_custom_call.1} parent=5 // pred_fallthru
        _
      %p182 = scmp.le.s32.totalorder 1, %s16
      %p183 = scmp.lt.s32.totalorder %s16, 3
      %p184 = pnand %p182, %p183
      %p185 = pneg %p184
      // Predicated region
      $region29: #{tpu_custom_call.1} parent=5 // pred_check
        _
      $region30: #{tpu_custom_call.1} parent=5 // pred_check_branch
        %187 = sbr.rel (%p184) target = $region32
      $region31: #{tpu_custom_call.1} parent=5 // pred_region
        %s188 = ssub.s32 %s16, 1
        %s189 = sand.u32 %s43, 1
        %s190 = scalar_lea.sflag [#allocation4], %s189
        %s191 = sand.u32 %s43, 1
        %s192 = smul.addr %s191, 8
        %s193 = scalar_lea.vmem [#allocation3], %s192
        // Predicated region
        $region33: #{tpu_custom_call.1} parent=31 // pred_check
          %p194 = pneg %p56
        $region34: #{tpu_custom_call.1} parent=31 // pred_check_branch
          %196 = sbr.rel (%p194) target = $region36
        $region35: #{tpu_custom_call.1} parent=31 // pred_region
          %198 = dma.done %s190, 128
        $region36: #{tpu_custom_call.1} parent=31 // pred_fallthru
          _
        // Predicated region
        $region37: #{tpu_custom_call.1} parent=31 // pred_check
          %p199 = pneg %p77
        $region38: #{tpu_custom_call.1} parent=31 // pred_check_branch
          %201 = sbr.rel (%p199) target = $region40
        $region39: #{tpu_custom_call.1} parent=31 // pred_region
          %203 = dma.done [#allocation7], 384
        $region40: #{tpu_custom_call.1} parent=31 // pred_fallthru
          _
        %s204 = sand.u32 %s43, 1
        %s205 = scalar_lea.sflag [#allocation4], %s204
        %s206 = sand.u32 %s43, 1
        %s207 = smul.addr %s206, 8
        %s208 = scalar_lea.vmem [#allocation3], %s207
        %p209 = pneg %p56
        %p210 = pneg %p53
        %p211 = pneg %p77
        %p212 = pneg %p74
        %p213 = pneg %p98
        %p214 = pneg %p95
        %p215 = pneg %p126
        %p216 = pneg %p123
        %s217 = sand.u32 %s113, 1
        %s218 = scalar_lea.sflag [#allocation5], %s217
        %s219 = sand.u32 %s113, 1
        %s220 = smul.addr %s219, 4
        %s221 = scalar_lea.vmem [#allocation8], %s220
        %v223 = vld [vmem:[%s193] sm:$0xff]
        %v224 = vpack.c.bf16 %v223, %v223
        %p225 = scmp.eq.s32.totalorder %s26, 0
        // Predicated region
        $region41: #{tpu_custom_call.1} parent=31 // pred_check
          %p226 = pneg %p225
        $region42: #{tpu_custom_call.1} parent=31 // pred_check_branch
          %228 = sbr.rel (%p226) target = $region44
        $region43: #{tpu_custom_call.1} parent=31 // pred_region
          %vm229 = vcmask 125952
          %230 = vst.msk [vmem:[#allocation2] sm:$0xf] %vm229, 0
          %231 = vst.msk [vmem:[#allocation2 + $0x4] sm:$0xf] %vm229, 0
        $region44: #{tpu_custom_call.1} parent=31 // pred_fallthru
          _
        %vm232 = vcmask 125952
        %233 = vst.msk [vmem:[#allocation2 + $0x8] sm:$0xf] %vm232, %v224
        %v234 = vld [vmem:[#allocation6] sm:$0xf]
        %v235 = vld [vmem:[#allocation6 + $0x4] sm:$0xf]
        %v236 = vld [vmem:[#allocation2 + $0x4] sm:$0x8]
        %v237 = vld [vmem:[#allocation2 + $0x8] sm:$0xf]
        %s238 = scalar_lea.vmem [#allocation6], 8
        %v239 = vld [vmem:[%s238] sm:$0xf]
        %v240 = vld [vmem:[%s238 + $0x4] sm:$0xf]
        %v243 = vunpack.c.l.b16 %v236
        %v244 = vunpack.c.l.b16 %v237
        %v245 = vpack.c.b16 %v244, %v243
        %v247 = vshrl.u32 %v245, 16
        %v249 = vrot.slane %v247, 3
        %v250 = vshll.u32 %v245, 16
        %v252 = vrot.slane %v250, 4
        %v253 = vor.u32 %v249, %v252
        %v256 = vunpack.c.l.b16 %v239
        %v257 = vunpack.c.l.b16 %v240
        %v258 = vpack.c.b16 %v257, %v256
        %vm260 = vcmask 130048
        %v262 = vsel %vm260, %v253, 0
        %264 = vmatpush.bf16.msra.mxu0 0
        %265 = vmatpush.bf16.msra.mxu0 0
        %266 = vmatpush.bf16.msra.mxu0 0
        %267 = vmatpush.bf16.msra.mxu0 0
        %268 = vmatpush.bf16.msra.mxu0 0
        %269 = vmatpush.bf16.msra.mxu0 0
        %270 = vmatpush.bf16.msra.mxu0 0
        %271 = vmatpush.bf16.msra.mxu0 %v258
        %272 = vmatmul.bf16.gmra.mxu0 %v262
        %v273 = vpop.f32.mrf.mxu0
        %v274 = vadd.f32 0.0, %v273
        %v275 = vpop.f32.mrf.mxu0
        %276 = vdwg.mxu0
        %v279 = vunpack.c.l.b16 %v234
        %v280 = vunpack.c.l.b16 %v235
        %v281 = vpack.c.b16 %v280, %v279
        %v284 = vsel %vm260, %v224, 0
        %286 = vmatpush.bf16.msra.mxu0 0
        %287 = vmatpush.bf16.msra.mxu0 0
        %288 = vmatpush.bf16.msra.mxu0 0
        %289 = vmatpush.bf16.msra.mxu0 0
        %290 = vmatpush.bf16.msra.mxu0 0
        %291 = vmatpush.bf16.msra.mxu0 0
        %292 = vmatpush.bf16.msra.mxu0 0
        %293 = vmatpush.bf16.msra.mxu0 %v281
        %294 = vmatmul.bf16.gmra.mxu0 %v284
        %v295 = vpop.f32.mrf.mxu0
        %v296 = vadd.f32 %v274, %v295
        %v297 = vpop.f32.mrf.mxu0
        %298 = vdwg.mxu0
        %v299 = vld [vmem:[#allocation2 + $0x8] sm:$0x7]
        %s300 = scalar_lea.vmem [#allocation6], 16
        %v301 = vld [vmem:[%s300] sm:$0xf]
        %v302 = vld [vmem:[%s300 + $0x4] sm:$0xf]
        %v304 = vunpack.c.l.b16 %v299
        %v305 = vpack.c.b16 %v304, %v243
        %v306 = vrot.slane %v305, 3
        %v309 = vunpack.c.l.b16 %v301
        %v310 = vunpack.c.l.b16 %v302
        %v311 = vpack.c.b16 %v310, %v309
        %v314 = vsel %vm260, %v306, 0
        %316 = vmatpush.bf16.msra.mxu0 0
        %317 = vmatpush.bf16.msra.mxu0 0
        %318 = vmatpush.bf16.msra.mxu0 0
        %319 = vmatpush.bf16.msra.mxu0 0
        %320 = vmatpush.bf16.msra.mxu0 0
        %321 = vmatpush.bf16.msra.mxu0 0
        %322 = vmatpush.bf16.msra.mxu0 0
        %323 = vmatpush.bf16.msra.mxu0 %v311
        %324 = vmatmul.bf16.gmra.mxu0 %v314
        %v325 = vpop.f32.mrf.mxu0
        %v326 = vadd.f32 0.0, %v325
        %v327 = vpop.f32.mrf.mxu0
        %328 = vdwg.mxu0
        %v329 = vadd.f32 %v296, %v326
        %v330 = vld [vmem:[%s2] sm:$0x1]
        %v332 = vperm.slane %v330, 0
        %v334 = vadd.f32 %v329, %v332
        %v335 = vmax.f32 %v334, 0.0
        %v336 = vpack.c.bf16 %v335, %v335
        %vm337 = vcmask 257024
        %338 = vst.msk [vmem:[%s221] sm:$0xf] %vm337, %v336
        %vm339 = vcmask 125955
        %340 = vst.msk [vmem:[#allocation2 + $0x4] sm:$0x8] %vm339, %v224
        %s341 = sand.u32 %s113, 1
        %s342 = scalar_lea.sflag [#allocation5], %s341
        %s343 = sand.u32 %s113, 1
        %s344 = smul.addr %s343, 4
        %s345 = scalar_lea.vmem [#allocation8], %s344
        // Predicated region
        $region45: #{tpu_custom_call.1} parent=31 // pred_check
          %p346 = pneg %p123
        $region46: #{tpu_custom_call.1} parent=31 // pred_check_branch
          %348 = sbr.rel (%p346) target = $region48
        $region47: #{tpu_custom_call.1} parent=31 // pred_region
          %350 = vsyncadd %s342, 0
          %s351 = sadd.s32 %s26, %s25
          %s352 = smul.addr %s351, 4
          %s353 = scalar_lea.hbm %s3, %s352
          %s355 = sshll.u32 %s345, 4
          %s356 = int_to_ptr.vmem [resolvable:$true] %s355
          %s357 = sshll.u32 %s353, 4
          %s358 = int_to_ptr.hbm [resolvable:$true] %s357
          %360 = dma.vmem_to_hbm [thread:$0]  %s356, 64, %s358, %s342
        $region48: #{tpu_custom_call.1} parent=31 // pred_fallthru
          _
      $region32: #{tpu_custom_call.1} parent=5 // pred_fallthru
        _
      %p361 = scmp.le.s32.totalorder 2, %s16
      // Predicated region
      $region49: #{tpu_custom_call.1} parent=5 // pred_check
        %p362 = pneg %p361
      $region50: #{tpu_custom_call.1} parent=5 // pred_check_branch
        %364 = sbr.rel (%p362) target = $region52
      $region51: #{tpu_custom_call.1} parent=5 // pred_region
        %s365 = ssub.s32 %s16, 2
        // Predicated region
        $region53: #{tpu_custom_call.1} parent=51 // pred_check
          %p366 = pneg %p129
        $region54: #{tpu_custom_call.1} parent=51 // pred_check_branch
          %368 = sbr.rel (%p366) target = $region56
        $region55: #{tpu_custom_call.1} parent=51 // pred_region
          %s369 = sand.u32 %s114, 1
          %s370 = scalar_lea.sflag [#allocation5], %s369
          %s371 = sand.u32 %s114, 1
          %s372 = smul.addr %s371, 4
          %s373 = scalar_lea.vmem [#allocation8], %s372
          %375 = dma.done %s370, 64
        $region56: #{tpu_custom_call.1} parent=51 // pred_fallthru
          _
      $region52: #{tpu_custom_call.1} parent=5 // pred_fallthru
        _
    $region6: #{tpu_custom_call.1} parent=1 // loop_footer
      %s20 = sadd.s32 1, %s16
    $region7: #{tpu_custom_call.1} parent=1 // loop_footer_branch
      %15 = sbr.rel target = $region3
    $region8: #{tpu_custom_call.1} parent=1 // loop_exit
      _
    %376 = vsyncpa [#allocation4], 1
    %s377 = scalar_lea.sflag [#allocation4], 1
    %378 = vsyncpa %s377, 1
    %379 = vsyncpa [#allocation7], 1
    %380 = vsyncpa [#allocation5], 1
    %s381 = scalar_lea.sflag [#allocation5], 1
    %382 = vsyncpa %s381, 1

</llo_original>
